<compile_context>
chip_gen: v7x
topology: tpu7x:2x2x1
jax: 0.10.0
libtpu: 0.0.40
codegen_flags: <defaults>
</compile_context>

<pallas_src>
import math
from functools import partial

import jax
import jax.numpy as jnp
from jax.experimental import pallas as pl
from jax.experimental.pallas import tpu as pltpu

RRELU_SLOPE = (1.0 / 8.0 + 1.0 / 3.0) / 2.0   # F.rrelu deterministic (eval) slope
NORM_EPS = 1e-12                              # F.normalize eps
# Set to jnp.bfloat16 on v6e/v7x for 2x MXU throughput / half the weight DMA bytes
# (accumulation stays f32).  Kept f32 here for parity with the float32 PyTorch module.
MATMUL_DTYPE = jnp.float32


def _round_up(x, m):
    return ((x + m - 1) // m) * m


# ----------------------------- Pallas kernels --------------------------------

def _matmul_kernel(a_ref, b_ref, o_ref):
    """Row-tiled (M,K)@(K,N): used for emb_rel @ W_neighbor (once) and h0 @ W_neighbor."""
    a = a_ref[...].astype(MATMUL_DTYPE)
    b = b_ref[...].astype(MATMUL_DTYPE)
    o_ref[...] = jnp.dot(a, b, preferred_element_type=jnp.float32)


def _evolve_kernel(h_ref, agg_ref, deg_ref, wcat_ref, btime_ref, wneigh_ref,
                   hout_ref, hw_ref):
    """Fused per-timestep kernel on one row tile of entities:
         RGCN apply_func (sum_msg * 1/deg) + masked self/evolve loop + rrelu
         + RecurrentRGCN time gate (sigmoid) + L2 row-normalize
         + h_new @ W_neighbor (next timestep's per-node message matmul).
       The three DxD gate weights arrive concatenated as one (D, 3D) operand so a single
       wide MXU matmul covers loop_weight / evolve_loop_weight / time_gate_weight."""
    h = h_ref[...]                                           # (T, D) f32
    deg = deg_ref[...]                                       # (T, 1) in-degree
    inv_deg = 1.0 / jnp.maximum(deg, 1.0)                    # comp_deg_norm (exact; lane-sparse)
    agg = agg_ref[...] * inv_deg                             # apply_func: h * norm

    fused = jnp.dot(h.astype(MATMUL_DTYPE), wcat_ref[...].astype(MATMUL_DTYPE),
                    preferred_element_type=jnp.float32)      # (T, 3D) single MXU pass
    D = h.shape[1]
    loop_self = fused[:, :D]
    loop_evo = fused[:, D:2 * D]
    gate_lin = fused[:, 2 * D:]

    has_in = deg > 0.0                                       # (T, 1): in-degree > 0 mask
    pre = agg + jnp.where(has_in, loop_self, loop_evo)       # masked loop / evolve_loop weight
    current_h = jnp.where(pre >= 0.0, pre, pre * RRELU_SLOPE)    # F.rrelu (eval)

    gate = gate_lin + btime_ref[...]
    tw = pl.reciprocal(1.0 + jnp.exp(-gate), approx=True)    # sigmoid via EUP exp + vrcp

    h_new = tw * current_h + (1.0 - tw) * h
    sumsq = jnp.sum(h_new * h_new, axis=-1, keepdims=True)
    inv_nrm = jax.lax.rsqrt(jnp.maximum(sumsq, NORM_EPS * NORM_EPS))   # == 1/max(||h||, eps)
    h_out = h_new * inv_nrm                                  # F.normalize(dim=1)

    hout_ref[...] = h_out
    hw_ref[...] = jnp.dot(h_out.astype(MATMUL_DTYPE), wneigh_ref[...].astype(MATMUL_DTYPE),
                          preferred_element_type=jnp.float32)


# ------------------------------- wrappers -------------------------------------

def pallas_matmul(a, b, *, tile_m=512):
    """Row-tiled matmul; rows are padded up to the tile so no tail rows are dropped."""
    M, K = a.shape
    K2, N = b.shape
    assert K == K2
    tm = min(tile_m, _round_up(M, 8))
    Mp = _round_up(M, tm)
    if Mp != M:
        a = jnp.pad(a, ((0, Mp - M), (0, 0)))
    out = pl.pallas_call(
        _matmul_kernel,
        out_shape=jax.ShapeDtypeStruct((Mp, N), jnp.float32),
        grid_spec=pltpu.PrefetchScalarGridSpec(
            num_scalar_prefetch=0,
            grid=(Mp // tm,),
            in_specs=[pl.BlockSpec((tm, K), lambda i: (i, 0)),
                      pl.BlockSpec((K, N), lambda i: (0, 0))],
            out_specs=pl.BlockSpec((tm, N), lambda i: (i, 0)),
        ),
        compiler_params=pltpu.CompilerParams(dimension_semantics=("parallel",)),
    )(a, b)
    return out[:M] if Mp != M else out


def evolve_step(h, agg, deg, w_cat, b_time, w_neighbor, *, tile_n=512):
    """Fused RGCN apply + self-loop + rrelu + time gate + normalize + next-step h@Wn."""
    N, D = h.shape
    tn = min(tile_n, _round_up(N, 8))
    Np = _round_up(N, tn)
    if Np != N:
        pad = ((0, Np - N), (0, 0))
        h = jnp.pad(h, pad)
        agg = jnp.pad(agg, pad)
        deg = jnp.pad(deg, pad)
    h_new, hw_new = pl.pallas_call(
        _evolve_kernel,
        out_shape=(jax.ShapeDtypeStruct((Np, D), jnp.float32),
                   jax.ShapeDtypeStruct((Np, D), jnp.float32)),
        grid_spec=pltpu.PrefetchScalarGridSpec(
            num_scalar_prefetch=0,
            grid=(Np // tn,),
            in_specs=[
                pl.BlockSpec((tn, D), lambda i: (i, 0)),       # h (prev entity emb)
                pl.BlockSpec((tn, D), lambda i: (i, 0)),       # summed messages
                pl.BlockSpec((tn, 1), lambda i: (i, 0)),       # in-degree
                pl.BlockSpec((D, 3 * D), lambda i: (0, 0)),    # [loop | evolve_loop | time_gate]
                pl.BlockSpec((1, D), lambda i: (0, 0)),        # time_gate_bias
                pl.BlockSpec((D, D), lambda i: (0, 0)),        # weight_neighbor
            ],
            out_specs=(pl.BlockSpec((tn, D), lambda i: (i, 0)),
                       pl.BlockSpec((tn, D), lambda i: (i, 0))),
        ),
        compiler_params=pltpu.CompilerParams(dimension_semantics=("parallel",)),
    )(h, agg, deg, w_cat, b_time, w_neighbor)
    if Np != N:
        h_new, hw_new = h_new[:N], hw_new[:N]
    return h_new, hw_new


# ---------------------------- RecurrentRGCN.forward ---------------------------

@partial(jax.jit, static_argnums=(0,))
def _rgcn_timestep(num_ents, h, hW, relW, src, dst, rel, w_cat, b_time, w_neighbor):
    # UnionRGCNLayer message:  (h[src] + emb_rel[rel]) @ Wn  ==  hW[src] + relW[rel]
    msg = hW[src] + relW[rel]
    # TODO(synk): the data-dependent scatter-add (DGL fn.sum) stays as XLA glue; fusing it
    # into the Pallas kernel would need per-destination segment offsets via scalar prefetch.
    agg = jax.ops.segment_sum(msg, dst, num_segments=num_ents)
    deg = jax.ops.segment_sum(jnp.ones_like(dst, jnp.float32), dst, num_segments=num_ents)
    # Fused RGCN apply + time gate + normalize + next-step h@W_neighbor (one Pallas kernel)
    return evolve_step(h, agg, deg[:, None], w_cat, b_time, w_neighbor)


def recurrent_rgcn_forward(params, graphs, num_ents):
    # layer_norm=False (default)  ->  h = dynamic_emb (no initial normalize)
    h = params["dynamic_emb"]
    w_cat = jnp.concatenate([params["loop_weight"],
                             params["evolve_loop_weight"],
                             params["time_gate_weight"]], axis=1)       # (D, 3D)
    # emb_rel is constant over forward() -> emb_rel @ W_neighbor hoisted out of the loop.
    relW = pallas_matmul(params["emb_rel"], params["weight_neighbor"])
    hW = pallas_matmul(h, params["weight_neighbor"])                    # h(0) @ W_neighbor
    evolve_embs = []
    for (node_id, src, dst, rel) in graphs:
        # CEN graphs cover all entities with node_id == arange -> identity gather elided.
        h, hW = _rgcn_timestep(num_ents, h, hW, relW, src, dst, rel,
                               w_cat, params["time_gate_bias"], params["weight_neighbor"])
        evolve_embs.append(h)
    return evolve_embs, params["emb_rel"]


# ------------------------------ param init ------------------------------------

def xavier_normal(key, shape, gain=1.0):
    std = gain * math.sqrt(2.0 / (shape[0] + shape[1]))
    return std * jax.random.normal(key, shape, dtype=jnp.float32)


def xavier_uniform(key, shape, gain=1.0):
    bound = gain * math.sqrt(6.0 / (shape[0] + shape[1]))
    return jax.random.uniform(key, shape, dtype=jnp.float32,
                              minval=-bound, maxval=bound)


if __name__ == "__main__":
    num_ents, num_rels, h_dim = 64, 4, 128
    num_edges, seq_len = 64, 3
    relu_gain = math.sqrt(2.0)

    key = jax.random.PRNGKey(0)
    k = jax.random.split(key, 8)
    params = {
        "emb_rel": xavier_normal(k[0], (2 * num_rels, h_dim)),                   # xavier_normal_
        "dynamic_emb": jax.random.normal(k[1], (num_ents, h_dim), jnp.float32),  # normal_
        "time_gate_weight": xavier_uniform(k[2], (h_dim, h_dim), gain=relu_gain),
        "time_gate_bias": jnp.zeros((1, h_dim), jnp.float32),
        "weight_neighbor": xavier_uniform(k[3], (h_dim, h_dim), gain=relu_gain),
        "loop_weight": xavier_uniform(k[4], (h_dim, h_dim), gain=relu_gain),
        "evolve_loop_weight": xavier_uniform(k[5], (h_dim, h_dim), gain=relu_gain),
    }

    graphs = []
    for t in range(seq_len):
        gk = jax.random.split(jax.random.fold_in(key, 100 + t), 3)
        node_id = jnp.arange(num_ents, dtype=jnp.int32)
        src = jax.random.randint(gk[0], (num_edges,), 0, num_ents, dtype=jnp.int32)
        dst = jax.random.randint(gk[1], (num_edges,), 0, num_ents, dtype=jnp.int32)
        rel = jax.random.randint(gk[2], (num_edges,), 0, 2 * num_rels, dtype=jnp.int32)
        graphs.append((node_id, src, dst, rel))

    evolve_embs, emb_rel = recurrent_rgcn_forward(params, graphs, num_ents)
    jax.block_until_ready(evolve_embs)
    jax.block_until_ready(emb_rel)

    assert len(evolve_embs) == seq_len
    assert evolve_embs[-1].shape == (num_ents, h_dim)
    assert emb_rel.shape == (2 * num_rels, h_dim)
    assert all(bool(jnp.all(jnp.isfinite(e))) for e in evolve_embs)
    print("KERNEL_OK")
</pallas_src>

<mosaic_0001>
module attributes {stable_mosaic.version = 11 : i64} {
  func.func @_matmul_kernel(%arg0: i32, %arg1: memref<8x128xf32, #tpu.memory_space<vmem>>, %arg2: memref<128x128xf32, #tpu.memory_space<vmem>>, %arg3: memref<8x128xf32, #tpu.memory_space<vmem>>) attributes {dimension_semantics = [#tpu.dimension_semantics<parallel>], iteration_bounds = array<i64: 1>, scalar_prefetch = 0 : i64, scratch_operands = 0 : i64, tpu.core_type = #tpu.core_type<tc>, window_params = [{transform_indices = @transform_0, window_bounds = array<i64: 8, 128>}, {pipeline_mode = #tpu.pipeline_mode<synchronous>, transform_indices = @transform_1, window_bounds = array<i64: 128, 128>}, {transform_indices = @transform_2, window_bounds = array<i64: 8, 128>}]} {
    %c0 = arith.constant 0 : index
    %c0_0 = arith.constant 0 : index
    %0 = vector.load %arg1[%c0, %c0_0] : memref<8x128xf32, #tpu.memory_space<vmem>>, vector<8x128xf32>
    %c0_1 = arith.constant 0 : index
    %c0_2 = arith.constant 0 : index
    %1 = vector.load %arg2[%c0_1, %c0_2] : memref<128x128xf32, #tpu.memory_space<vmem>>, vector<128x128xf32>
    %cst = arith.constant dense<0.000000e+00> : vector<8x128xf32>
    %2 = tpu.matmul %0, %1, %cst {dimension_numbers = #tpu.dot_dimension_numbers<[1], [0], [0], [1], [0, 0, 1, 1], [], []>} : vector<8x128xf32>, vector<128x128xf32>, vector<8x128xf32> -> vector<8x128xf32>
    %c0_3 = arith.constant 0 : index
    %c0_4 = arith.constant 0 : index
    %3 = vector.load %arg3[%c0_3, %c0_4] : memref<8x128xf32, #tpu.memory_space<vmem>>, vector<8x128xf32>
    tpu.vector_store %arg3[%c0_3, %c0_4], %2 {strides = array<i32>} : memref<8x128xf32, #tpu.memory_space<vmem>>, vector<8x128xf32>,
    return
  }
  func.func @transform_0(%arg0: i32) -> (i32, i32) {
    %c0_i32 = arith.constant 0 : i32
    %c0_i32_0 = arith.constant 0 : i32
    return %arg0, %c0_i32 : i32, i32
  }
  func.func @transform_1(%arg0: i32) -> (i32, i32) {
    %c0_i32 = arith.constant 0 : i32
    %c0_i32_0 = arith.constant 0 : i32
    %c0_i32_1 = arith.constant 0 : i32
    return %c0_i32, %c0_i32_0 : i32, i32
  }
  func.func @transform_2(%arg0: i32) -> (i32, i32) {
    %c0_i32 = arith.constant 0 : i32
    %c0_i32_0 = arith.constant 0 : i32
    return %arg0, %c0_i32 : i32, i32
  }
}

</mosaic_0001>

<llo_original>
// kernel: tpu_custom_call.1
$region0: #{tpu_custom_call.1}
  #allocation0 [shape = 'u32[]', space=smem, size = 0x4, offset = 0x4, fixed_abs, tag = 'smem constant byte address 0x4 - core index']
  #allocation1 [shape = 'u32[144,128]{1,0:T(1,128)}', space=vmem, size = 0x12000, scoped, tag = 'internal scratch']
  %s0 = inlined_call_operand.hbm [shape: f32[8,128], index: 0, kind: input, shape index: {}]
  %s1 = inlined_call_operand.hbm [shape: f32[128,128], index: 1, kind: input, shape index: {}]
  %s2 = inlined_call_operand.hbm [shape: f32[8,128], index: 2, kind: output, shape index: {}]
  %s3 = sld [smem:[#allocation0]]
  $region26: #{tpu_custom_call.1} parent=0
    _
  %s5 = ssub.s32 1, %s3
  %s6 = scalar_select 0, %s5, %s3
  $region1: #{tpu_custom_call.1} parent=0
    #allocation2 [shape = 'u8[4096]{0}', space=vmem, size = 0x1000, scoped, tag = 'input window, operand 0, single buffered']
    #allocation3 [shape = 's32[1]{0}', space=sflag, size = 0x4, scoped, tag = 'scoped memory for tpu_custom_call.1']
    #allocation4 [shape = 's32[1]{0}', space=sflag, size = 0x4, scoped, tag = 'scoped memory for tpu_custom_call.1']
    #allocation5 [shape = 'u8[65536]{0}', space=vmem, size = 0x10000, scoped, tag = 'input window, operand 1, single buffered']
    #allocation6 [shape = 's32[1]{0}', space=sflag, size = 0x4, scoped, tag = 'scoped memory for tpu_custom_call.1']
    #allocation7 [shape = 'u8[4096]{0}', space=vmem, size = 0x1000, scoped, tag = 'output window, operand 0, single buffered']
    %7 = vsyncpa [#allocation3], 0
    %8 = vsyncpa [#allocation6], 0
    %9 = vsyncpa [#allocation4], 0
    // Predicated region
    $region2: #{tpu_custom_call.1} parent=1 // pred_check
      _
    $region3: #{tpu_custom_call.1} parent=1 // pred_check_branch
      %11 = sbr.rel (0) target = $region5
    $region4: #{tpu_custom_call.1} parent=1 // pred_region
      %s13 = ssub.s32 128, 128
      %14 = vsyncadd [#allocation3], %s13
      %s16 = sshll.u32 [#allocation2], 4
      %s17 = int_to_ptr.vmem [resolvable:$true] %s16
      %19 = dma.hbm_to_vmem [thread:$0]  %s0, 128, %s17, [#allocation3]
    $region5: #{tpu_custom_call.1} parent=1 // pred_fallthru
      _
    // Predicated region
    $region6: #{tpu_custom_call.1} parent=1 // pred_check
      _
    $region7: #{tpu_custom_call.1} parent=1 // pred_check_branch
      %21 = sbr.rel (0) target = $region9
    $region8: #{tpu_custom_call.1} parent=1 // pred_region
      %s23 = ssub.s32 2048, 2048
      %24 = vsyncadd [#allocation6], %s23
      %s25 = sshll.u32 [#allocation5], 4
      %s26 = int_to_ptr.vmem [resolvable:$true] %s25
      %31 = dma.hbm_to_vmem [thread:$0]  %s1, 2048, %s26, [#allocation6], 128, 128, 8
    $region9: #{tpu_custom_call.1} parent=1 // pred_fallthru
      _
    // Predicated region
    $region10: #{tpu_custom_call.1} parent=1 // pred_check
      _
    $region11: #{tpu_custom_call.1} parent=1 // pred_check_branch
      %33 = sbr.rel (0) target = $region13
    $region12: #{tpu_custom_call.1} parent=1 // pred_region
      %34 = dma.done [#allocation3], 128
    $region13: #{tpu_custom_call.1} parent=1 // pred_fallthru
      _
    // Predicated region
    $region14: #{tpu_custom_call.1} parent=1 // pred_check
      _
    $region15: #{tpu_custom_call.1} parent=1 // pred_check_branch
      %36 = sbr.rel (0) target = $region17
    $region16: #{tpu_custom_call.1} parent=1 // pred_region
      %37 = dma.done [#allocation6], 2048
    $region17: #{tpu_custom_call.1} parent=1 // pred_fallthru
      _
    %v38 = vld [vmem:[#allocation2] sm:$0xff]
    %v39 = vld [vmem:[#allocation5] sm:$0xff]
    %v40 = vld [vmem:[#allocation5 + $0x8] sm:$0xff]
    %v41 = vld [vmem:[#allocation5 + $0x10] sm:$0xff]
    %v42 = vld [vmem:[#allocation5 + $0x18] sm:$0xff]
    %v43 = vld [vmem:[#allocation5 + $0x20] sm:$0xff]
    %v44 = vld [vmem:[#allocation5 + $0x28] sm:$0xff]
    %v45 = vld [vmem:[#allocation5 + $0x30] sm:$0xff]
    %v46 = vld [vmem:[#allocation5 + $0x38] sm:$0xff]
    %v47 = vld [vmem:[#allocation5 + $0x40] sm:$0xff]
    %v48 = vld [vmem:[#allocation5 + $0x48] sm:$0xff]
    %v49 = vld [vmem:[#allocation5 + $0x50] sm:$0xff]
    %v50 = vld [vmem:[#allocation5 + $0x58] sm:$0xff]
    %v51 = vld [vmem:[#allocation5 + $0x60] sm:$0xff]
    %v52 = vld [vmem:[#allocation5 + $0x68] sm:$0xff]
    %v53 = vld [vmem:[#allocation5 + $0x70] sm:$0xff]
    %v54 = vld [vmem:[#allocation5 + $0x78] sm:$0xff]
    %55 = vmatprep.subr.mxu0 0.0
    %56 = vmatpush1.msra.mxu0 %v39
    %57 = vmatprep.subr.mxu0 0.0
    %58 = vmatpush1.msra.mxu0 %v40
    %59 = vmatprep.subr.mxu0 0.0
    %60 = vmatpush1.msra.mxu0 %v41
    %61 = vmatprep.subr.mxu0 0.0
    %62 = vmatpush1.msra.mxu0 %v42
    %63 = vmatprep.subr.mxu0 0.0
    %64 = vmatpush1.msra.mxu0 %v43
    %65 = vmatprep.subr.mxu0 0.0
    %66 = vmatpush1.msra.mxu0 %v44
    %67 = vmatprep.subr.mxu0 0.0
    %68 = vmatpush1.msra.mxu0 %v45
    %69 = vmatprep.subr.mxu0 0.0
    %70 = vmatpush1.msra.mxu0 %v46
    %71 = vmatprep.subr.mxu0 0.0
    %72 = vmatpush1.msra.mxu0 %v47
    %73 = vmatprep.subr.mxu0 0.0
    %74 = vmatpush1.msra.mxu0 %v48
    %75 = vmatprep.subr.mxu0 0.0
    %76 = vmatpush1.msra.mxu0 %v49
    %77 = vmatprep.subr.mxu0 0.0
    %78 = vmatpush1.msra.mxu0 %v50
    %79 = vmatprep.subr.mxu0 0.0
    %80 = vmatpush1.msra.mxu0 %v51
    %81 = vmatprep.subr.mxu0 0.0
    %82 = vmatpush1.msra.mxu0 %v52
    %83 = vmatprep.subr.mxu0 0.0
    %84 = vmatpush1.msra.mxu0 %v53
    %85 = vmatprep.subr.mxu0 0.0
    %86 = vmatpush1.msra.mxu0 %v54
    %87 = vmatprep.subr.mxu0 0.0
    %88 = vmatpush1.msra.mxu0 0.0
    %89 = vmatprep.subr.mxu0 0.0
    %90 = vmatpush1.msra.mxu0 0.0
    %91 = vmatprep.subr.mxu0 0.0
    %92 = vmatpush1.msra.mxu0 0.0
    %93 = vmatprep.subr.mxu0 0.0
    %94 = vmatpush1.msra.mxu0 0.0
    %95 = vmatprep.subr.mxu0 0.0
    %96 = vmatpush1.msra.mxu0 0.0
    %97 = vmatprep.subr.mxu0 0.0
    %98 = vmatpush1.msra.mxu0 0.0
    %99 = vmatprep.subr.mxu0 0.0
    %100 = vmatpush1.msra.mxu0 0.0
    %101 = vmatprep.subr.mxu0 0.0
    %102 = vmatpush1.msra.mxu0 0.0
    %103 = vmatprep.subr.mxu0 0.0
    %104 = vmatpush1.msra.mxu0 0.0
    %105 = vmatprep.subr.mxu0 0.0
    %106 = vmatpush1.msra.mxu0 0.0
    %107 = vmatprep.subr.mxu0 0.0
    %108 = vmatpush1.msra.mxu0 0.0
    %109 = vmatprep.subr.mxu0 0.0
    %110 = vmatpush1.msra.mxu0 0.0
    %111 = vmatprep.subr.mxu0 0.0
    %112 = vmatpush1.msra.mxu0 0.0
    %113 = vmatprep.subr.mxu0 0.0
    %114 = vmatpush1.msra.mxu0 0.0
    %115 = vmatprep.subr.mxu0 0.0
    %116 = vmatpush1.msra.mxu0 0.0
    %117 = vmatprep.subr.mxu0 0.0
    %118 = vmatpush1.msra.mxu0 0.0
    %119 = vmatprep.mubr.f32.mxu0 0.0
    %120 = vmatmul.mubr.f32.gmra.mrb[0].mxu0 %v38
    %v121 = vpop.f32.mrb[0].mxu0
    %v122 = vadd.f32 0.0, %v121
    %v123 = vpop.f32.mrb[0].mxu0
    %124 = vdwg.mxu0
    %125 = vst [vmem:[#allocation7] sm:$0xff] %v122
    // Predicated region
    $region18: #{tpu_custom_call.1} parent=1 // pred_check
      _
    $region19: #{tpu_custom_call.1} parent=1 // pred_check_branch
      %127 = sbr.rel (0) target = $region21
    $region20: #{tpu_custom_call.1} parent=1 // pred_region
      %s129 = ssub.s32 128, 128
      %130 = vsyncadd [#allocation4], %s129
      %s132 = sshll.u32 [#allocation7], 4
      %s133 = int_to_ptr.vmem [resolvable:$true] %s132
      %135 = dma.vmem_to_hbm [thread:$0]  %s133, 128, %s2, [#allocation4]
    $region21: #{tpu_custom_call.1} parent=1 // pred_fallthru
      _
    // Predicated region
    $region22: #{tpu_custom_call.1} parent=1 // pred_check
      _
    $region23: #{tpu_custom_call.1} parent=1 // pred_check_branch
      %137 = sbr.rel (0) target = $region25
    $region24: #{tpu_custom_call.1} parent=1 // pred_region
      %138 = dma.done [#allocation4], 128
    $region25: #{tpu_custom_call.1} parent=1 // pred_fallthru
      _
    %139 = vsyncpa [#allocation3], 1
    %140 = vsyncpa [#allocation6], 1
    %141 = vsyncpa [#allocation4], 1

</llo_original>
